<compile_context>
chip_gen: v7x
topology: tpu7x:2x2x1
jax: 0.10.0
libtpu: 0.0.40
codegen_flags: <defaults>
</compile_context>

<pallas_src>
import functools
import math

import jax
import jax.numpy as jnp
from jax.experimental import pallas as pl
from jax.experimental.pallas import tpu as pltpu

LANE = 128      # lane width (last-dim tiling granularity)
SUBLANE = 8     # f32 sublane granularity (second-to-last dim)


def _round_up(n, m):
    return ((n + m - 1) // m) * m


# ----------------------------------------------------------------------------
# One-time hardware / capability probes (memoized).  These are the ONLY places
# with a broad except; the real kernel path never wraps its compile in one.
# ----------------------------------------------------------------------------
@functools.lru_cache(maxsize=None)
def _vmem_capacity_bytes():
    try:
        return int(pltpu.get_tpu_info().vmem_capacity_bytes)
    except Exception:
        return 64 << 20  # conservative fallback: v7x per-TC VMEM


@functools.lru_cache(maxsize=None)
def _buffered1_supported():
    """Can resident operands be single-buffered (pipeline_mode=pl.Buffered(1))?

    Tiny throw-away pallas_call, run once and cached, so the production kernel
    call is deterministic and exception-free (a try/except around the real
    call would be dead code under jax.jit and could mask genuine errors).
    """
    try:
        def _probe(x_ref, w_ref, o_ref):
            o_ref[...] = x_ref[...] + w_ref[...]

        call = pl.pallas_call(
            _probe,
            out_shape=jax.ShapeDtypeStruct((2 * SUBLANE, LANE), jnp.float32),
            grid_spec=pltpu.PrefetchScalarGridSpec(
                num_scalar_prefetch=0,
                grid=(2,),
                in_specs=[
                    pl.BlockSpec((SUBLANE, LANE), lambda i: (i, 0)),
                    pl.BlockSpec((SUBLANE, LANE), lambda i: (0, 0),
                                 pipeline_mode=pl.Buffered(1)),
                ],
                out_specs=pl.BlockSpec((SUBLANE, LANE), lambda i: (i, 0)),
            ),
        )
        jax.block_until_ready(
            call(jnp.zeros((2 * SUBLANE, LANE), jnp.float32),
                 jnp.zeros((SUBLANE, LANE), jnp.float32)))
        return True
    except Exception:
        return False


# ----------------------------------------------------------------------------
# Kernel
# ----------------------------------------------------------------------------
def decoder_layer_kernel(x_ref, w1_ref, b1_ref, w2_ref, b2_ref, w3_ref, b3_ref,
                         o_ref):
    """Fused MLP: relu(tanh(tanh(x@W1+b1)@W2+b2)@W3+b3).

    Dots run on the MXU with bf16 operands and f32 accumulation; bias add,
    tanh and relu stay in f32 on the VPU/EUP (safe on all generations).
    """
    x = x_ref[...]

    h1 = jnp.dot(x.astype(jnp.bfloat16), w1_ref[...],
                 preferred_element_type=jnp.float32)
    h1 = jnp.tanh(h1 + b1_ref[...])

    h2 = jnp.dot(h1.astype(jnp.bfloat16), w2_ref[...],
                 preferred_element_type=jnp.float32)
    h2 = jnp.tanh(h2 + b2_ref[...])

    h3 = jnp.dot(h2.astype(jnp.bfloat16), w3_ref[...],
                 preferred_element_type=jnp.float32)
    o_ref[...] = jnp.maximum(h3 + b3_ref[...], 0.0).astype(o_ref.dtype)


# ----------------------------------------------------------------------------
# Parameter prep (do once): pad feature dims to 128, cast weights to bf16.
# ----------------------------------------------------------------------------
def prepare_decoder_params(params):
    in_dims, hid_dims = params["W1"].shape
    out_dims = params["W3"].shape[1]
    in_pad = _round_up(in_dims, LANE)
    hid_pad = _round_up(hid_dims, LANE)
    out_pad = _round_up(out_dims, LANE)

    def pad2(a, rows, cols):
        return jnp.pad(a, ((0, rows - a.shape[0]), (0, cols - a.shape[1])))

    prep = dict(
        W1=pad2(params["W1"], in_pad, hid_pad).astype(jnp.bfloat16),
        b1=pad2(params["b1"], 1, hid_pad).astype(jnp.float32),
        W2=pad2(params["W2"], hid_pad, hid_pad).astype(jnp.bfloat16),
        b2=pad2(params["b2"], 1, hid_pad).astype(jnp.float32),
        W3=pad2(params["W3"], hid_pad, out_pad).astype(jnp.bfloat16),
        b3=pad2(params["b3"], 1, out_pad).astype(jnp.float32),
    )
    dims = dict(in_dims=in_dims, hid_dims=hid_dims, out_dims=out_dims,
                in_pad=in_pad, hid_pad=hid_pad, out_pad=out_pad)
    return prep, dims


# ----------------------------------------------------------------------------
# Batch-tile selection
# ----------------------------------------------------------------------------
def _choose_block_b(B, target=512):
    """Pick a batch tile.

    * B < 16: single tile (nothing worth sharding or pipelining).
    * Otherwise: aim for tiles near `target` rows (256-1024 sweet spot),
      always >= 2 grid steps (so v7x's second TensorCore gets work), an even
      step count when possible, and size the tile FROM B so the tail tile is
      never mostly padding.
    """
    if B < 16:
        return _round_up(B, SUBLANE)
    n_steps = max(2, pl.cdiv(B, target))
    if n_steps % 2:
        n_steps += 1
    return max(SUBLANE, _round_up(pl.cdiv(B, n_steps), SUBLANE))


# ----------------------------------------------------------------------------
# Wrapper
# ----------------------------------------------------------------------------
def decoder_layer(x, prep, dims, *, block_b=None, target_block_b=512):
    """x: [B, in_dims] (f32 or bf16); prep/dims from prepare_decoder_params.

    Output dtype follows x.dtype: hand over bf16 activations to halve HBM I/O
    (no standalone cast is inserted in this wrapper).
    """
    B, in_dims = x.shape
    assert in_dims == dims["in_dims"]
    in_pad, hid_pad, out_pad = dims["in_pad"], dims["hid_pad"], dims["out_pad"]
    out_dims = dims["out_dims"]
    out_dtype = x.dtype

    if block_b is None:
        block_b = _choose_block_b(B, target_block_b)
    block_b = max(SUBLANE, _round_up(block_b, SUBLANE))

    # ---- VMEM budget: actual footprint, clamped to real chip capacity. ----
    weights_bf = 2 * (in_pad * hid_pad + hid_pad * hid_pad + hid_pad * out_pad)
    bias_f32 = 4 * (2 * hid_pad + out_pad)
    use_buf1 = _buffered1_supported()
    w_buf = 1 if use_buf1 else 2
    resident = w_buf * (weights_bf + bias_f32)

    x_bytes = jnp.dtype(x.dtype).itemsize
    o_bytes = jnp.dtype(out_dtype).itemsize
    cap = _vmem_capacity_bytes()
    headroom = 4 << 20

    def tile_bytes(bb):
        io = 2 * bb * (in_pad * x_bytes + out_pad * o_bytes)   # double-buffered x/out
        interm = 4 * bb * (3 * hid_pad + out_pad)              # f32 temporaries (rough)
        return io + interm

    # Shrink block_b only if the per-tile footprint on top of the resident
    # weights would not fit.  (For weight blow-out itself, see the N-axis TODO
    # at the top of the file.)
    while block_b > SUBLANE and resident + tile_bytes(block_b) > cap - headroom:
        block_b = max(SUBLANE, _round_up(block_b // 2, SUBLANE))

    B_pad = _round_up(B, block_b)
    grid = (B_pad // block_b,)

    # Zero-pad x on batch and feature axes (exact: pad weights/biases are zero,
    # tanh(0)=0, relu(0)=0; padding is stripped below).
    x_p = jnp.pad(x, ((0, B_pad - B), (0, in_pad - in_dims)))

    need = resident + tile_bytes(block_b)
    vmem_limit = int(min(max(need + (2 << 20), 16 << 20), cap - headroom))

    cost = pl.CostEstimate(
        flops=2 * B_pad * (in_pad * hid_pad + hid_pad * hid_pad
                           + hid_pad * out_pad),
        transcendentals=2 * B_pad * hid_pad,                 # two tanh layers
        bytes_accessed=(B_pad * in_pad * x_bytes + B_pad * out_pad * o_bytes
                        + weights_bf + bias_f32),
    )

    weight_mode = pl.Buffered(1) if use_buf1 else None

    def const_spec(shape):
        # Constant block index across the whole grid (resident operand);
        # single-buffered when the installed Pallas supports Buffered(1).
        if weight_mode is None:
            return pl.BlockSpec(shape, lambda i: (0, 0))
        return pl.BlockSpec(shape, lambda i: (0, 0), pipeline_mode=weight_mode)

    in_specs = [
        pl.BlockSpec((block_b, in_pad), lambda i: (i, 0)),   # x tile
        const_spec((in_pad, hid_pad)),                       # W1
        const_spec((1, hid_pad)),                            # b1
        const_spec((hid_pad, hid_pad)),                      # W2
        const_spec((1, hid_pad)),                            # b2
        const_spec((hid_pad, out_pad)),                      # W3
        const_spec((1, out_pad)),                            # b3
    ]
    out_specs = pl.BlockSpec((block_b, out_pad), lambda i: (i, 0))

    out = pl.pallas_call(
        decoder_layer_kernel,
        out_shape=jax.ShapeDtypeStruct((B_pad, out_pad), out_dtype),
        grid_spec=pltpu.PrefetchScalarGridSpec(
            num_scalar_prefetch=0,
            grid=grid,
            in_specs=in_specs,
            out_specs=out_specs,
        ),
        compiler_params=pltpu.CompilerParams(
            dimension_semantics=("parallel",),
            vmem_limit_bytes=vmem_limit,
        ),
        cost_estimate=cost,
    )(x_p, prep["W1"], prep["b1"], prep["W2"], prep["b2"],
      prep["W3"], prep["b3"])

    # TODO(synk): for skinny out_dims (e.g. 16 padded to 128) the padded store
    # writes 8x the useful bytes; if the consumer can take a packed
    # (B/8, 8*out_dims) lane-dense layout, present that instead of slicing.
    return out[:B, :out_dims]


# ----------------------------------------------------------------------------
# Init + references
# ----------------------------------------------------------------------------
def init_decoder_params(key, in_dims, out_dims):
    """Mirrors DecoderLayer.init_weights: W ~ U(-1/sqrt(fan_in), +), b = 0.

    Weights stored as [fan_in, fan_out] (transposed vs nn.Linear) so the
    kernel computes x @ W + b directly.
    """
    hid_dims = (in_dims + out_dims) // 2
    k1, k2, k3 = jax.random.split(key, 3)

    def lin(k, fan_in, fan_out):
        stdv = 1.0 / math.sqrt(fan_in)
        w = jax.random.uniform(k, (fan_in, fan_out), jnp.float32,
                               minval=-stdv, maxval=stdv)
        b = jnp.zeros((1, fan_out), jnp.float32)
        return w, b

    W1, b1 = lin(k1, in_dims, hid_dims)
    W2, b2 = lin(k2, hid_dims, hid_dims)
    W3, b3 = lin(k3, hid_dims, out_dims)
    return dict(W1=W1, b1=b1, W2=W2, b2=b2, W3=W3, b3=b3)


def decoder_layer_ref(x, p, *, matmul_dtype=jnp.float32):
    """Pure-JAX reference; matmul_dtype=bf16 matches the kernel's numerics."""
    def dot(a, b):
        return jnp.dot(a.astype(matmul_dtype), b.astype(matmul_dtype),
                       preferred_element_type=jnp.float32)
    h1 = jnp.tanh(dot(x, p["W1"]) + p["b1"])
    h2 = jnp.tanh(dot(h1, p["W2"]) + p["b2"])
    return jnp.maximum(dot(h2, p["W3"]) + p["b3"], 0.0)


# ----------------------------------------------------------------------------
# Test
# ----------------------------------------------------------------------------
if __name__ == "__main__":
    key = jax.random.PRNGKey(0)
    k_param, k_x1, k_x2 = jax.random.split(key, 3)

    in_dims, out_dims = 32, 16          # hid_dims = 24
    params = init_decoder_params(k_param, in_dims, out_dims)
    prep, dims = prepare_decoder_params(params)

    # Small batch: single grid step (B < 16 path).
    x_small = jax.random.normal(k_x1, (8, in_dims), jnp.float32)
    out_small = jax.block_until_ready(decoder_layer(x_small, prep, dims))
    ref_small = decoder_layer_ref(x_small, params, matmul_dtype=jnp.bfloat16)
    assert out_small.shape == (8, out_dims)
    assert jnp.allclose(out_small, ref_small, atol=1e-4, rtol=1e-4)

    # Odd batch, auto tile: block_b derived from B (300 -> 2 steps of 152,
    # only 4 padded rows), "parallel" grid for pipelining / megacore.
    x_big = jax.random.normal(k_x2, (300, in_dims), jnp.float32)
    out_big = jax.block_until_ready(decoder_layer(x_big, prep, dims))
    ref_big = decoder_layer_ref(x_big, params, matmul_dtype=jnp.bfloat16)
    assert out_big.shape == (300, out_dims)
    assert jnp.allclose(out_big, ref_big, atol=1e-4, rtol=1e-4)

    # Explicit small tile: exercises the multi-step + batch-padding path.
    out_128 = jax.block_until_ready(decoder_layer(x_big, prep, dims,
                                                  block_b=128))
    assert jnp.allclose(out_128, ref_big, atol=1e-4, rtol=1e-4)

    # bf16 I/O path (caller hands over bf16; output comes back bf16).
    x_bf = x_big.astype(jnp.bfloat16)
    out_bf = jax.block_until_ready(decoder_layer(x_bf, prep, dims))
    ref_bf = decoder_layer_ref(x_bf.astype(jnp.float32), params,
                               matmul_dtype=jnp.bfloat16)
    assert out_bf.dtype == jnp.bfloat16
    assert jnp.allclose(out_bf.astype(jnp.float32), ref_bf,
                        atol=2e-2, rtol=2e-2)

    # Sanity check vs the full-f32 reference (bf16 weights, f32 accumulation).
    ref_f32 = decoder_layer_ref(x_big, params, matmul_dtype=jnp.float32)
    assert jnp.allclose(out_big, ref_f32, atol=5e-2, rtol=5e-2)

    print("KERNEL_OK")
</pallas_src>

<mosaic_0001>
module attributes {stable_mosaic.version = 11 : i64} {
  func.func @_probe(%arg0: i32, %arg1: memref<8x128xf32, #tpu.memory_space<vmem>>, %arg2: memref<8x128xf32, #tpu.memory_space<vmem>>, %arg3: memref<8x128xf32, #tpu.memory_space<vmem>>) attributes {dimension_semantics = [#tpu.dimension_semantics<arbitrary>], iteration_bounds = array<i64: 2>, scalar_prefetch = 0 : i64, scratch_operands = 0 : i64, tpu.core_type = #tpu.core_type<tc>, window_params = [{transform_indices = @transform_0, window_bounds = array<i64: 8, 128>}, {pipeline_mode = #tpu.pipeline_mode<synchronous>, transform_indices = @transform_1, window_bounds = array<i64: 8, 128>}, {transform_indices = @transform_2, window_bounds = array<i64: 8, 128>}]} {
    %c0 = arith.constant 0 : index
    %c0_0 = arith.constant 0 : index
    %0 = vector.load %arg1[%c0, %c0_0] : memref<8x128xf32, #tpu.memory_space<vmem>>, vector<8x128xf32>
    %c0_1 = arith.constant 0 : index
    %c0_2 = arith.constant 0 : index
    %1 = vector.load %arg2[%c0_1, %c0_2] : memref<8x128xf32, #tpu.memory_space<vmem>>, vector<8x128xf32>
    %2 = arith.addf %0, %1 : vector<8x128xf32>
    %c0_3 = arith.constant 0 : index
    %c0_4 = arith.constant 0 : index
    %3 = vector.load %arg3[%c0_3, %c0_4] : memref<8x128xf32, #tpu.memory_space<vmem>>, vector<8x128xf32>
    tpu.vector_store %arg3[%c0_3, %c0_4], %2 {strides = array<i32>} : memref<8x128xf32, #tpu.memory_space<vmem>>, vector<8x128xf32>,
    return
  }
  func.func @transform_0(%arg0: i32) -> (i32, i32) {
    %c0_i32 = arith.constant 0 : i32
    %c0_i32_0 = arith.constant 0 : i32
    return %arg0, %c0_i32 : i32, i32
  }
  func.func @transform_1(%arg0: i32) -> (i32, i32) {
    %c0_i32 = arith.constant 0 : i32
    %c0_i32_0 = arith.constant 0 : i32
    %c0_i32_1 = arith.constant 0 : i32
    return %c0_i32, %c0_i32_0 : i32, i32
  }
  func.func @transform_2(%arg0: i32) -> (i32, i32) {
    %c0_i32 = arith.constant 0 : i32
    %c0_i32_0 = arith.constant 0 : i32
    return %arg0, %c0_i32 : i32, i32
  }
}

module attributes {stable_mosaic.version = 11 : i64} {
  func.func @decoder_layer_kernel(%arg0: i32, %arg1: memref<8x128xf32, #tpu.memory_space<vmem>>, %arg2: memref<128x128xbf16, #tpu.memory_space<vmem>>, %arg3: memref<1x128xf32, #tpu.memory_space<vmem>>, %arg4: memref<128x128xbf16, #tpu.memory_space<vmem>>, %arg5: memref<1x128xf32, #tpu.memory_space<vmem>>, %arg6: memref<128x128xbf16, #tpu.memory_space<vmem>>, %arg7: memref<1x128xf32, #tpu.memory_space<vmem>>, %arg8: memref<8x128xf32, #tpu.memory_space<vmem>>) attributes {dimension_semantics = [#tpu.dimension_semantics<parallel>], iteration_bounds = array<i64: 1>, scalar_prefetch = 0 : i64, scratch_operands = 0 : i64, tpu.core_type = #tpu.core_type<tc>, window_params = [{transform_indices = @transform_0, window_bounds = array<i64: 8, 128>}, {pipeline_mode = #tpu.pipeline_mode<synchronous>, transform_indices = @transform_1, window_bounds = array<i64: 128, 128>}, {pipeline_mode = #tpu.pipeline_mode<synchronous>, transform_indices = @transform_2, window_bounds = array<i64: 1, 128>}, {pipeline_mode = #tpu.pipeline_mode<synchronous>, transform_indices = @transform_3, window_bounds = array<i64: 128, 128>}, {pipeline_mode = #tpu.pipeline_mode<synchronous>, transform_indices = @transform_4, window_bounds = array<i64: 1, 128>}, {pipeline_mode = #tpu.pipeline_mode<synchronous>, transform_indices = @transform_5, window_bounds = array<i64: 128, 128>}, {pipeline_mode = #tpu.pipeline_mode<synchronous>, transform_indices = @transform_6, window_bounds = array<i64: 1, 128>}, {transform_indices = @transform_7, window_bounds = array<i64: 8, 128>}]} {
    %c0 = arith.constant 0 : index
    %c0_0 = arith.constant 0 : index
    %0 = vector.load %arg1[%c0, %c0_0] : memref<8x128xf32, #tpu.memory_space<vmem>>, vector<8x128xf32>
    %1 = arith.truncf %0 : vector<8x128xf32> to vector<8x128xbf16>
    %c0_1 = arith.constant 0 : index
    %c0_2 = arith.constant 0 : index
    %2 = vector.load %arg2[%c0_1, %c0_2] : memref<128x128xbf16, #tpu.memory_space<vmem>>, vector<128x128xbf16>
    %cst = arith.constant dense<0.000000e+00> : vector<8x128xf32>
    %3 = tpu.matmul %1, %2, %cst {dimension_numbers = #tpu.dot_dimension_numbers<[1], [0], [0], [1], [0, 0, 1, 1], [], []>} : vector<8x128xbf16>, vector<128x128xbf16>, vector<8x128xf32> -> vector<8x128xf32>
    %c0_3 = arith.constant 0 : index
    %c0_4 = arith.constant 0 : index
    %4 = vector.load %arg3[%c0_3, %c0_4] : memref<1x128xf32, #tpu.memory_space<vmem>>, vector<1x128xf32>
    %5 = vector.broadcast %4 : vector<1x128xf32> to vector<8x128xf32>
    %6 = arith.addf %3, %5 : vector<8x128xf32>
    %7 = math.tanh %6 : vector<8x128xf32>
    %8 = arith.truncf %7 : vector<8x128xf32> to vector<8x128xbf16>
    %c0_5 = arith.constant 0 : index
    %c0_6 = arith.constant 0 : index
    %9 = vector.load %arg4[%c0_5, %c0_6] : memref<128x128xbf16, #tpu.memory_space<vmem>>, vector<128x128xbf16>
    %cst_7 = arith.constant dense<0.000000e+00> : vector<8x128xf32>
    %10 = tpu.matmul %8, %9, %cst_7 {dimension_numbers = #tpu.dot_dimension_numbers<[1], [0], [0], [1], [0, 0, 1, 1], [], []>} : vector<8x128xbf16>, vector<128x128xbf16>, vector<8x128xf32> -> vector<8x128xf32>
    %c0_8 = arith.constant 0 : index
    %c0_9 = arith.constant 0 : index
    %11 = vector.load %arg5[%c0_8, %c0_9] : memref<1x128xf32, #tpu.memory_space<vmem>>, vector<1x128xf32>
    %12 = vector.broadcast %11 : vector<1x128xf32> to vector<8x128xf32>
    %13 = arith.addf %10, %12 : vector<8x128xf32>
    %14 = math.tanh %13 : vector<8x128xf32>
    %15 = arith.truncf %14 : vector<8x128xf32> to vector<8x128xbf16>
    %c0_10 = arith.constant 0 : index
    %c0_11 = arith.constant 0 : index
    %16 = vector.load %arg6[%c0_10, %c0_11] : memref<128x128xbf16, #tpu.memory_space<vmem>>, vector<128x128xbf16>
    %cst_12 = arith.constant dense<0.000000e+00> : vector<8x128xf32>
    %17 = tpu.matmul %15, %16, %cst_12 {dimension_numbers = #tpu.dot_dimension_numbers<[1], [0], [0], [1], [0, 0, 1, 1], [], []>} : vector<8x128xbf16>, vector<128x128xbf16>, vector<8x128xf32> -> vector<8x128xf32>
    %c0_13 = arith.constant 0 : index
    %c0_14 = arith.constant 0 : index
    %18 = vector.load %arg7[%c0_13, %c0_14] : memref<1x128xf32, #tpu.memory_space<vmem>>, vector<1x128xf32>
    %19 = vector.broadcast %18 : vector<1x128xf32> to vector<8x128xf32>
    %20 = arith.addf %17, %19 : vector<8x128xf32>
    %cst_15 = arith.constant 0.000000e+00 : f32
    %21 = vector.broadcast %cst_15 : f32 to vector<8x128xf32>
    %22 = arith.maximumf %20, %21 : vector<8x128xf32>
    %c0_16 = arith.constant 0 : index
    %c0_17 = arith.constant 0 : index
    %23 = vector.load %arg8[%c0_16, %c0_17] : memref<8x128xf32, #tpu.memory_space<vmem>>, vector<8x128xf32>
    tpu.vector_store %arg8[%c0_16, %c0_17], %22 {strides = array<i32>} : memref<8x128xf32, #tpu.memory_space<vmem>>, vector<8x128xf32>,
    return
  }
  func.func @transform_0(%arg0: i32) -> (i32, i32) {
    %c0_i32 = arith.constant 0 : i32
    %c0_i32_0 = arith.constant 0 : i32
    return %arg0, %c0_i32 : i32, i32
  }
  func.func @transform_1(%arg0: i32) -> (i32, i32) {
    %c0_i32 = arith.constant 0 : i32
    %c0_i32_0 = arith.constant 0 : i32
    %c0_i32_1 = arith.constant 0 : i32
    return %c0_i32, %c0_i32_0 : i32, i32
  }
  func.func @transform_2(%arg0: i32) -> (i32, i32) {
    %c0_i32 = arith.constant 0 : i32
    %c0_i32_0 = arith.constant 0 : i32
    %c0_i32_1 = arith.constant 0 : i32
    return %c0_i32, %c0_i32_0 : i32, i32
  }
  func.func @transform_3(%arg0: i32) -> (i32, i32) {
    %c0_i32 = arith.constant 0 : i32
    %c0_i32_0 = arith.constant 0 : i32
    %c0_i32_1 = arith.constant 0 : i32
    return %c0_i32, %c0_i32_0 : i32, i32
  }
  func.func @transform_4(%arg0: i32) -> (i32, i32) {
    %c0_i32 = arith.constant 0 : i32
    %c0_i32_0 = arith.constant 0 : i32
    %c0_i32_1 = arith.constant 0 : i32
    return %c0_i32, %c0_i32_0 : i32, i32
  }
  func.func @transform_5(%arg0: i32) -> (i32, i32) {
    %c0_i32 = arith.constant 0 : i32
    %c0_i32_0 = arith.constant 0 : i32
    %c0_i32_1 = arith.constant 0 : i32
    return %c0_i32, %c0_i32_0 : i32, i32
  }
  func.func @transform_6(%arg0: i32) -> (i32, i32) {
    %c0_i32 = arith.constant 0 : i32
    %c0_i32_0 = arith.constant 0 : i32
    %c0_i32_1 = arith.constant 0 : i32
    return %c0_i32, %c0_i32_0 : i32, i32
  }
  func.func @transform_7(%arg0: i32) -> (i32, i32) {
    %c0_i32 = arith.constant 0 : i32
    %c0_i32_0 = arith.constant 0 : i32
    return %arg0, %c0_i32 : i32, i32
  }
}

</mosaic_0001>

<llo_original>
// kernel: tpu_custom_call.1
$region0: #{tpu_custom_call.1}
  #allocation0 [shape = 'u32[]', space=smem, size = 0x4, offset = 0x4, fixed_abs, tag = 'smem constant byte address 0x4 - core index']
  #allocation1 [shape = 'u32[144,128]{1,0:T(1,128)}', space=vmem, size = 0x12000, scoped, tag = 'internal scratch']
  %s0 = inlined_call_operand.hbm [shape: f32[16,128], index: 0, kind: input, shape index: {}]
  %s1 = inlined_call_operand.hbm [shape: f32[8,128], index: 1, kind: input, shape index: {}]
  %s2 = inlined_call_operand.hbm [shape: f32[16,128], index: 2, kind: output, shape index: {}]
  %s3 = sld [smem:[#allocation0]]
  $region49: #{tpu_custom_call.1} parent=0
    _
  %s5 = ssub.s32 1, %s3
  %s6 = scalar_select 0, %s5, %s3
  $region1: #{tpu_custom_call.1} parent=0
    #allocation2 [shape = 'u8[8192]{0}', space=vmem, size = 0x2000, scoped, tag = 'input window, operand 0']
    #allocation3 [shape = 's32[2]{0}', space=sflag, size = 0x8, scoped, tag = 'scoped memory for tpu_custom_call.1']
    #allocation4 [shape = 's32[2]{0}', space=sflag, size = 0x8, scoped, tag = 'scoped memory for tpu_custom_call.1']
    #allocation5 [shape = 'u8[4096]{0}', space=vmem, size = 0x1000, scoped, tag = 'input window, operand 1, single buffered']
    #allocation6 [shape = 's32[1]{0}', space=sflag, size = 0x4, scoped, tag = 'scoped memory for tpu_custom_call.1']
    #allocation7 [shape = 'u8[8192]{0}', space=vmem, size = 0x2000, scoped, tag = 'output window, operand 0']
    %7 = vsyncpa [#allocation3], 0
    %s8 = scalar_lea.sflag [#allocation3], 1
    %9 = vsyncpa %s8, 0
    %10 = vsyncpa [#allocation6], 0
    %11 = vsyncpa [#allocation4], 0
    %s12 = scalar_lea.sflag [#allocation4], 1
    %13 = vsyncpa %s12, 0
    loop: start=0, step=1, limit=4
    $region2: #{tpu_custom_call.1} parent=1 // loop_pre_header
      _
    $region3: #{tpu_custom_call.1} parent=1 // loop_header
      %s15 = sphi 0, %s19
      %p16 = scmp.ge.s32.totalorder %s15, 4
      %s25 = sphi 0, %s27
      %s28 = sphi 0, %s25
      %s29 = sphi 0, %s28
      %s45 = sphi 0, %s29
      %s49 = sphi 0, %s49
      %s51 = sphi 0, %s49
      %s52 = sphi 0, %s51
      %s66 = sphi 0, %s52
      %s72 = sphi 0, %s74
      %s75 = sphi 0, %s72
      %s76 = sphi 0, %s75
      %s92 = sphi 0, %s76
    $region4: #{tpu_custom_call.1} parent=1 // loop_header_branch
      %18 = sbr.rel (%p16) target = $region8
    $region5: #{tpu_custom_call.1} parent=1 // loop_body
      %s20 = ssub.s32 %s15, 1
      %s21 = ssub.s32 %s15, 2
      %s22 = sadd.s32 %s15, 1
      %s23 = ssub.s32 %s15, %s22
      %p24 = scmp.eq.s32.totalorder %s23, 0
      %s26 = sadd.s32 %s25, 1
      %s27 = scalar_select %p24, %s25, %s26
      %p30 = pneg %p24
      %p31 = scmp.eq.s32.totalorder %s15, 1
      %p32 = por %p30, %p31
      %p33 = scmp.ne.s32.totalorder %s25, %s28
      %p34 = scmp.eq.s32.totalorder %s15, 0
      %p35 = por %p33, %p34
      %p36 = scmp.ne.s32.totalorder %s25, %s28
      %p37 = scmp.eq.s32.totalorder %s20, 1
      %p38 = por %p36, %p37
      %p39 = scmp.ne.s32.totalorder %s28, %s29
      %p40 = scmp.eq.s32.totalorder %s20, 0
      %p41 = por %p39, %p40
      %p42 = scmp.ne.s32.totalorder %s28, %s29
      %p43 = scmp.eq.s32.totalorder %s21, 1
      %p44 = por %p42, %p43
      %p46 = scmp.ne.s32.totalorder %s29, %s45
      %p47 = scmp.eq.s32.totalorder %s21, 0
      %p48 = por %p46, %p47
      %s50 = sadd.s32 %s49, 1
      %p53 = scmp.eq.s32.totalorder %s15, 1
      %p54 = scmp.ne.s32.totalorder %s49, %s51
      %p55 = scmp.eq.s32.totalorder %s15, 0
      %p56 = por %p54, %p55
      %p57 = scmp.ne.s32.totalorder %s49, %s51
      %p58 = scmp.eq.s32.totalorder %s20, 1
      %p59 = por %p57, %p58
      %p60 = scmp.ne.s32.totalorder %s51, %s52
      %p61 = scmp.eq.s32.totalorder %s20, 0
      %p62 = por %p60, %p61
      %p63 = scmp.ne.s32.totalorder %s51, %s52
      %p64 = scmp.eq.s32.totalorder %s21, 1
      %p65 = por %p63, %p64
      %p67 = scmp.ne.s32.totalorder %s52, %s66
      %p68 = scmp.eq.s32.totalorder %s21, 0
      %p69 = por %p67, %p68
      %s70 = ssub.s32 %s15, %s22
      %p71 = scmp.eq.s32.totalorder %s70, 0
      %s73 = sadd.s32 %s72, 1
      %s74 = scalar_select %p71, %s72, %s73
      %p77 = pneg %p71
      %p78 = scmp.eq.s32.totalorder %s15, 1
      %p79 = por %p77, %p78
      %p80 = scmp.ne.s32.totalorder %s72, %s75
      %p81 = scmp.eq.s32.totalorder %s15, 0
      %p82 = por %p80, %p81
      %p83 = scmp.ne.s32.totalorder %s72, %s75
      %p84 = scmp.eq.s32.totalorder %s20, 1
      %p85 = por %p83, %p84
      %p86 = scmp.ne.s32.totalorder %s75, %s76
      %p87 = scmp.eq.s32.totalorder %s20, 0
      %p88 = por %p86, %p87
      %p89 = scmp.ne.s32.totalorder %s75, %s76
      %p90 = scmp.eq.s32.totalorder %s21, 1
      %p91 = por %p89, %p90
      %p93 = scmp.ne.s32.totalorder %s76, %s92
      %p94 = scmp.eq.s32.totalorder %s21, 0
      %p95 = por %p93, %p94
      %p96 = scmp.le.s32.totalorder 1, %s15
      %p97 = scmp.lt.s32.totalorder %s15, 3
      %p98 = pnand %p96, %p97
      %p99 = pneg %p98
      // Predicated region
      $region9: #{tpu_custom_call.1} parent=5 // pred_check
        _
      $region10: #{tpu_custom_call.1} parent=5 // pred_check_branch
        %101 = sbr.rel (%p98) target = $region12
      $region11: #{tpu_custom_call.1} parent=5 // pred_region
        %s102 = ssub.s32 %s15, 1
        // Predicated region
        $region13: #{tpu_custom_call.1} parent=11 // pred_check
          %p103 = pneg %p62
        $region14: #{tpu_custom_call.1} parent=11 // pred_check_branch
          %105 = sbr.rel (%p103) target = $region16
        $region15: #{tpu_custom_call.1} parent=11 // pred_region
          %s107 = ssub.s32 128, 128
          %108 = vsyncadd [#allocation6], %s107
          %s110 = sshll.u32 [#allocation5], 4
          %s111 = int_to_ptr.vmem [resolvable:$true] %s110
          %113 = dma.hbm_to_vmem [thread:$0]  %s1, 128, %s111, [#allocation6]
        $region16: #{tpu_custom_call.1} parent=11 // pred_fallthru
          _
      $region12: #{tpu_custom_call.1} parent=5 // pred_fallthru
        _
      %p114 = scmp.lt.s32.totalorder %s15, 2
      // Predicated region
      $region17: #{tpu_custom_call.1} parent=5 // pred_check
        %p115 = pneg %p114
      $region18: #{tpu_custom_call.1} parent=5 // pred_check_branch
        %117 = sbr.rel (%p115) target = $region20
      $region19: #{tpu_custom_call.1} parent=5 // pred_region
        // Predicated region
        $region21: #{tpu_custom_call.1} parent=19 // pred_check
          %p118 = pneg %p35
        $region22: #{tpu_custom_call.1} parent=19 // pred_check_branch
          %120 = sbr.rel (%p118) target = $region24
        $region23: #{tpu_custom_call.1} parent=19 // pred_region
          %s121 = sand.u32 %s25, 1
          %s122 = scalar_lea.sflag [#allocation3], %s121
          %s123 = sand.u32 %s25, 1
          %s124 = smul.addr %s123, 8
          %s125 = scalar_lea.vmem [#allocation2], %s124
          %s127 = ssub.s32 128, 128
          %128 = vsyncadd %s122, %s127
          %s129 = smul.addr %s15, 128
          %s130 = scalar_lea.hbm %s0, %s129
          %s132 = sshll.u32 %s125, 4
          %s133 = int_to_ptr.vmem [resolvable:$true] %s132
          %135 = dma.hbm_to_vmem [thread:$0]  %s130, 128, %s133, %s122
        $region24: #{tpu_custom_call.1} parent=19 // pred_fallthru
          _
      $region20: #{tpu_custom_call.1} parent=5 // pred_fallthru
        _
      %p136 = scmp.le.s32.totalorder 1, %s15
      %p137 = scmp.lt.s32.totalorder %s15, 3
      %p138 = pnand %p136, %p137
      %p139 = pneg %p138
      // Predicated region
      $region25: #{tpu_custom_call.1} parent=5 // pred_check
        _
      $region26: #{tpu_custom_call.1} parent=5 // pred_check_branch
        %141 = sbr.rel (%p138) target = $region28
      $region27: #{tpu_custom_call.1} parent=5 // pred_region
        %s142 = ssub.s32 %s15, 1
        %s143 = sand.u32 %s28, 1
        %s144 = scalar_lea.sflag [#allocation3], %s143
        %s145 = sand.u32 %s28, 1
        %s146 = smul.addr %s145, 8
        %s147 = scalar_lea.vmem [#allocation2], %s146
        // Predicated region
        $region29: #{tpu_custom_call.1} parent=27 // pred_check
          %p148 = pneg %p41
        $region30: #{tpu_custom_call.1} parent=27 // pred_check_branch
          %150 = sbr.rel (%p148) target = $region32
        $region31: #{tpu_custom_call.1} parent=27 // pred_region
          %151 = dma.done %s144, 128
        $region32: #{tpu_custom_call.1} parent=27 // pred_fallthru
          _
        // Predicated region
        $region33: #{tpu_custom_call.1} parent=27 // pred_check
          %p152 = pneg %p62
        $region34: #{tpu_custom_call.1} parent=27 // pred_check_branch
          %154 = sbr.rel (%p152) target = $region36
        $region35: #{tpu_custom_call.1} parent=27 // pred_region
          %155 = dma.done [#allocation6], 128
        $region36: #{tpu_custom_call.1} parent=27 // pred_fallthru
          _
        %s156 = sand.u32 %s28, 1
        %s157 = scalar_lea.sflag [#allocation3], %s156
        %s158 = sand.u32 %s28, 1
        %s159 = smul.addr %s158, 8
        %s160 = scalar_lea.vmem [#allocation2], %s159
        %p161 = pneg %p41
        %p162 = pneg %p38
        %p163 = pneg %p62
        %p164 = pneg %p59
        %p165 = pneg %p88
        %p166 = pneg %p85
        %s167 = sand.u32 %s75, 1
        %s168 = scalar_lea.sflag [#allocation4], %s167
        %s169 = sand.u32 %s75, 1
        %s170 = smul.addr %s169, 8
        %s171 = scalar_lea.vmem [#allocation7], %s170
        %v172 = vld [vmem:[%s147] sm:$0xff]
        %v173 = vld [vmem:[#allocation5] sm:$0xff]
        %v174 = vadd.f32 %v172, %v173
        %175 = vst [vmem:[%s171] sm:$0xff] %v174
        %s176 = sand.u32 %s75, 1
        %s177 = scalar_lea.sflag [#allocation4], %s176
        %s178 = sand.u32 %s75, 1
        %s179 = smul.addr %s178, 8
        %s180 = scalar_lea.vmem [#allocation7], %s179
        // Predicated region
        $region37: #{tpu_custom_call.1} parent=27 // pred_check
          %p181 = pneg %p85
        $region38: #{tpu_custom_call.1} parent=27 // pred_check_branch
          %183 = sbr.rel (%p181) target = $region40
        $region39: #{tpu_custom_call.1} parent=27 // pred_region
          %s185 = ssub.s32 128, 128
          %186 = vsyncadd %s177, %s185
          %s187 = smul.addr %s20, 128
          %s188 = scalar_lea.hbm %s2, %s187
          %s190 = sshll.u32 %s180, 4
          %s191 = int_to_ptr.vmem [resolvable:$true] %s190
          %193 = dma.vmem_to_hbm [thread:$0]  %s191, 128, %s188, %s177
        $region40: #{tpu_custom_call.1} parent=27 // pred_fallthru
          _
      $region28: #{tpu_custom_call.1} parent=5 // pred_fallthru
        _
      %p194 = scmp.le.s32.totalorder 2, %s15
      // Predicated region
      $region41: #{tpu_custom_call.1} parent=5 // pred_check
        %p195 = pneg %p194
      $region42: #{tpu_custom_call.1} parent=5 // pred_check_branch
        %197 = sbr.rel (%p195) target = $region44
      $region43: #{tpu_custom_call.1} parent=5 // pred_region
        %s198 = ssub.s32 %s15, 2
        // Predicated region
        $region45: #{tpu_custom_call.1} parent=43 // pred_check
          %p199 = pneg %p91
        $region46: #{tpu_custom_call.1} parent=43 // pred_check_branch
          %201 = sbr.rel (%p199) target = $region48
        $region47: #{tpu_custom_call.1} parent=43 // pred_region
          %s202 = sand.u32 %s76, 1
          %s203 = scalar_lea.sflag [#allocation4], %s202
          %s204 = sand.u32 %s76, 1
          %s205 = smul.addr %s204, 8
          %s206 = scalar_lea.vmem [#allocation7], %s205
          %207 = dma.done %s203, 128
        $region48: #{tpu_custom_call.1} parent=43 // pred_fallthru
          _
      $region44: #{tpu_custom_call.1} parent=5 // pred_fallthru
        _
    $region6: #{tpu_custom_call.1} parent=1 // loop_footer
      %s19 = sadd.s32 1, %s15
    $region7: #{tpu_custom_call.1} parent=1 // loop_footer_branch
      %14 = sbr.rel target = $region3
    $region8: #{tpu_custom_call.1} parent=1 // loop_exit
      _
    %208 = vsyncpa [#allocation3], 1
    %s209 = scalar_lea.sflag [#allocation3], 1
    %210 = vsyncpa %s209, 1
    %211 = vsyncpa [#allocation6], 1
    %212 = vsyncpa [#allocation4], 1
    %s213 = scalar_lea.sflag [#allocation4], 1
    %214 = vsyncpa %s213, 1

// kernel: tpu_custom_call.1
$region0: #{tpu_custom_call.1}
  #allocation0 [shape = 'u32[]', space=smem, size = 0x4, offset = 0x4, fixed_abs, tag = 'smem constant byte address 0x4 - core index']
  #allocation1 [shape = 'u32[144,128]{1,0:T(1,128)}', space=vmem, size = 0x12000, scoped, tag = 'internal scratch']
  %s0 = inlined_call_operand.hbm [shape: f32[8,128], index: 0, kind: input, shape index: {}]
  %s1 = inlined_call_operand.hbm [shape: bf16[128,128], index: 1, kind: input, shape index: {}]
  %s2 = inlined_call_operand.vmem [shape: f32[1,128], index: 2, kind: input, shape index: {}]
  %s3 = inlined_call_operand.hbm [shape: bf16[128,128], index: 3, kind: input, shape index: {}]
  %s4 = inlined_call_operand.vmem [shape: f32[1,128], index: 4, kind: input, shape index: {}]
  %s5 = inlined_call_operand.hbm [shape: bf16[128,128], index: 5, kind: input, shape index: {}]
  %s6 = inlined_call_operand.vmem [shape: f32[1,128], index: 6, kind: input, shape index: {}]
  %s7 = inlined_call_operand.hbm [shape: f32[8,128], index: 7, kind: output, shape index: {}]
  %s8 = sld [smem:[#allocation0]]
  $region54: #{tpu_custom_call.1} parent=0
    _
  %s10 = ssub.s32 1, %s8
  %s11 = scalar_select 0, %s10, %s8
  $region1: #{tpu_custom_call.1} parent=0
    #allocation2 [shape = 'u8[4096]{0}', space=vmem, size = 0x1000, scoped, tag = 'input window, operand 0, single buffered']
    #allocation3 [shape = 's32[1]{0}', space=sflag, size = 0x4, scoped, tag = 'scoped memory for tpu_custom_call.1']
    #allocation4 [shape = 's32[1]{0}', space=sflag, size = 0x4, scoped, tag = 'scoped memory for tpu_custom_call.1']
    #allocation5 [shape = 'u8[32768]{0}', space=vmem, size = 0x8000, scoped, tag = 'input window, operand 1, single buffered']
    #allocation6 [shape = 's32[1]{0}', space=sflag, size = 0x4, scoped, tag = 'scoped memory for tpu_custom_call.1']
    #allocation7 [shape = 'u8[32768]{0}', space=vmem, size = 0x8000, scoped, tag = 'input window, operand 3, single buffered']
    #allocation8 [shape = 'u8[32768]{0}', space=vmem, size = 0x8000, scoped, tag = 'input window, operand 5, single buffered']
    #allocation9 [shape = 's32[1]{0}', space=sflag, size = 0x4, scoped, tag = 'scoped memory for tpu_custom_call.1']
    #allocation10 [shape = 'u8[4096]{0}', space=vmem, size = 0x1000, scoped, tag = 'output window, operand 0, single buffered']
    %12 = vsyncpa [#allocation3], 0
    %13 = vsyncpa [#allocation6], 0
    %14 = vsyncpa [#allocation9], 0
    %15 = vsyncpa [#allocation4], 0
    // Predicated region
    $region2: #{tpu_custom_call.1} parent=1 // pred_check
      _
    $region3: #{tpu_custom_call.1} parent=1 // pred_check_branch
      %17 = sbr.rel (0) target = $region5
    $region4: #{tpu_custom_call.1} parent=1 // pred_region
      %s19 = ssub.s32 128, 128
      %20 = vsyncadd [#allocation3], %s19
      %s22 = sshll.u32 [#allocation2], 4
      %s23 = int_to_ptr.vmem [resolvable:$true] %s22
      %25 = dma.hbm_to_vmem [thread:$0]  %s0, 128, %s23, [#allocation3]
    $region5: #{tpu_custom_call.1} parent=1 // pred_fallthru
      _
    // Predicated region
    $region6: #{tpu_custom_call.1} parent=1 // pred_check
      _
    $region7: #{tpu_custom_call.1} parent=1 // pred_check_branch
      %27 = sbr.rel (0) target = $region9
    $region8: #{tpu_custom_call.1} parent=1 // pred_region
      %s29 = ssub.s32 1024, 1024
      %30 = vsyncadd [#allocation6], %s29
      %s31 = sshll.u32 [#allocation5], 4
      %s32 = int_to_ptr.vmem [resolvable:$true] %s31
      %37 = dma.hbm_to_vmem [thread:$0]  %s1, 1024, %s32, [#allocation6], 64, 64, 4
    $region9: #{tpu_custom_call.1} parent=1 // pred_fallthru
      _
    // Predicated region
    $region10: #{tpu_custom_call.1} parent=1 // pred_check
      _
    $region11: #{tpu_custom_call.1} parent=1 // pred_check_branch
      %39 = sbr.rel (0) target = $region13
    $region12: #{tpu_custom_call.1} parent=1 // pred_region
      _
    $region13: #{tpu_custom_call.1} parent=1 // pred_fallthru
      _
    // Predicated region
    $region14: #{tpu_custom_call.1} parent=1 // pred_check
      _
    $region15: #{tpu_custom_call.1} parent=1 // pred_check_branch
      %41 = sbr.rel (0) target = $region17
    $region16: #{tpu_custom_call.1} parent=1 // pred_region
      %s43 = ssub.s32 1024, 1024
      %44 = vsyncadd [#allocation6], %s43
      %s45 = sshll.u32 [#allocation7], 4
      %s46 = int_to_ptr.vmem [resolvable:$true] %s45
      %51 = dma.hbm_to_vmem [thread:$0]  %s3, 1024, %s46, [#allocation6], 64, 64, 4
    $region17: #{tpu_custom_call.1} parent=1 // pred_fallthru
      _
    // Predicated region
    $region18: #{tpu_custom_call.1} parent=1 // pred_check
      _
    $region19: #{tpu_custom_call.1} parent=1 // pred_check_branch
      %53 = sbr.rel (0) target = $region21
    $region20: #{tpu_custom_call.1} parent=1 // pred_region
      _
    $region21: #{tpu_custom_call.1} parent=1 // pred_fallthru
      _
    // Predicated region
    $region22: #{tpu_custom_call.1} parent=1 // pred_check
      _
    $region23: #{tpu_custom_call.1} parent=1 // pred_check_branch
      %55 = sbr.rel (0) target = $region25
    $region24: #{tpu_custom_call.1} parent=1 // pred_region
      %s57 = ssub.s32 1024, 1024
      %58 = vsyncadd [#allocation9], %s57
      %s59 = sshll.u32 [#allocation8], 4
      %s60 = int_to_ptr.vmem [resolvable:$true] %s59
      %65 = dma.hbm_to_vmem [thread:$0]  %s5, 1024, %s60, [#allocation9], 64, 64, 4
    $region25: #{tpu_custom_call.1} parent=1 // pred_fallthru
      _
    // Predicated region
    $region26: #{tpu_custom_call.1} parent=1 // pred_check
      _
    $region27: #{tpu_custom_call.1} parent=1 // pred_check_branch
      %67 = sbr.rel (0) target = $region29
    $region28: #{tpu_custom_call.1} parent=1 // pred_region
      _
    $region29: #{tpu_custom_call.1} parent=1 // pred_fallthru
      _
    // Predicated region
    $region30: #{tpu_custom_call.1} parent=1 // pred_check
      _
    $region31: #{tpu_custom_call.1} parent=1 // pred_check_branch
      %69 = sbr.rel (0) target = $region33
    $region32: #{tpu_custom_call.1} parent=1 // pred_region
      %70 = dma.done [#allocation3], 128
    $region33: #{tpu_custom_call.1} parent=1 // pred_fallthru
      _
    // Predicated region
    $region34: #{tpu_custom_call.1} parent=1 // pred_check
      _
    $region35: #{tpu_custom_call.1} parent=1 // pred_check_branch
      %72 = sbr.rel (0) target = $region37
    $region36: #{tpu_custom_call.1} parent=1 // pred_region
      %73 = dma.done [#allocation6], 1024
    $region37: #{tpu_custom_call.1} parent=1 // pred_fallthru
      _
    // Predicated region
    $region38: #{tpu_custom_call.1} parent=1 // pred_check
      _
    $region39: #{tpu_custom_call.1} parent=1 // pred_check_branch
      %75 = sbr.rel (0) target = $region41
    $region40: #{tpu_custom_call.1} parent=1 // pred_region
      %76 = dma.done [#allocation6], 1024
    $region41: #{tpu_custom_call.1} parent=1 // pred_fallthru
      _
    // Predicated region
    $region42: #{tpu_custom_call.1} parent=1 // pred_check
      _
    $region43: #{tpu_custom_call.1} parent=1 // pred_check_branch
      %78 = sbr.rel (0) target = $region45
    $region44: #{tpu_custom_call.1} parent=1 // pred_region
      %79 = dma.done [#allocation9], 1024
    $region45: #{tpu_custom_call.1} parent=1 // pred_fallthru
      _
    %v81 = vld [vmem:[#allocation2] sm:$0xff]
    %v82 = vpack.c.bf16 %v81, %v81
    %v83 = vld [vmem:[#allocation5] sm:$0xf]
    %v84 = vld [vmem:[#allocation5 + $0x4] sm:$0xf]
    %v85 = vld [vmem:[#allocation5 + $0x8] sm:$0xf]
    %v86 = vld [vmem:[#allocation5 + $0xc] sm:$0xf]
    %v87 = vld [vmem:[#allocation5 + $0x10] sm:$0xf]
    %v88 = vld [vmem:[#allocation5 + $0x14] sm:$0xf]
    %v89 = vld [vmem:[#allocation5 + $0x18] sm:$0xf]
    %v90 = vld [vmem:[#allocation5 + $0x1c] sm:$0xf]
    %v91 = vld [vmem:[#allocation5 + $0x20] sm:$0xf]
    %v92 = vld [vmem:[#allocation5 + $0x24] sm:$0xf]
    %v93 = vld [vmem:[#allocation5 + $0x28] sm:$0xf]
    %v94 = vld [vmem:[#allocation5 + $0x2c] sm:$0xf]
    %v95 = vld [vmem:[#allocation5 + $0x30] sm:$0xf]
    %v96 = vld [vmem:[#allocation5 + $0x34] sm:$0xf]
    %v97 = vld [vmem:[#allocation5 + $0x38] sm:$0xf]
    %v98 = vld [vmem:[#allocation5 + $0x3c] sm:$0xf]
    %v99 = vld [vmem:[%s2] sm:$0x1]
    %v101 = vlaneseq
    %v102 = vshrl.u32 %v101, 7
    %v103 = vsub.s32 0, %v102
    %v104 = vrot.slane %v99, %v103
    %v122 = vunpack.c.l.b16 %v83
    %v123 = vunpack.c.l.b16 %v84
    %v124 = vunpack.c.l.b16 %v85
    %v125 = vunpack.c.l.b16 %v86
    %v126 = vunpack.c.l.b16 %v87
    %v127 = vunpack.c.l.b16 %v88
    %v128 = vunpack.c.l.b16 %v89
    %v129 = vunpack.c.l.b16 %v90
    %v130 = vunpack.c.l.b16 %v91
    %v131 = vunpack.c.l.b16 %v92
    %v132 = vunpack.c.l.b16 %v93
    %v133 = vunpack.c.l.b16 %v94
    %v134 = vunpack.c.l.b16 %v95
    %v135 = vunpack.c.l.b16 %v96
    %v136 = vunpack.c.l.b16 %v97
    %v137 = vunpack.c.l.b16 %v98
    %v138 = vpack.c.b16 %v123, %v122
    %v139 = vpack.c.b16 %v125, %v124
    %v140 = vpack.c.b16 %v127, %v126
    %v141 = vpack.c.b16 %v129, %v128
    %v142 = vpack.c.b16 %v131, %v130
    %v143 = vpack.c.b16 %v133, %v132
    %v144 = vpack.c.b16 %v135, %v134
    %v145 = vpack.c.b16 %v137, %v136
    %154 = vmatprep.subr.bf16.mxu0 0
    %155 = vmatpush1.bf16.msra.mxu0 %v138
    %156 = vmatprep.subr.bf16.mxu0 0
    %157 = vmatpush1.bf16.msra.mxu0 %v139
    %158 = vmatprep.subr.bf16.mxu0 0
    %159 = vmatpush1.bf16.msra.mxu0 %v140
    %160 = vmatprep.subr.bf16.mxu0 0
    %161 = vmatpush1.bf16.msra.mxu0 %v141
    %162 = vmatprep.subr.bf16.mxu0 0
    %163 = vmatpush1.bf16.msra.mxu0 %v142
    %164 = vmatprep.subr.bf16.mxu0 0
    %165 = vmatpush1.bf16.msra.mxu0 %v143
    %166 = vmatprep.subr.bf16.mxu0 0
    %167 = vmatpush1.bf16.msra.mxu0 %v144
    %168 = vmatprep.subr.bf16.mxu0 0
    %169 = vmatpush1.bf16.msra.mxu0 %v145
    %170 = vmatprep.subr.bf16.mxu0 0
    %171 = vmatpush1.bf16.msra.mxu0 0
    %172 = vmatprep.subr.bf16.mxu0 0
    %173 = vmatpush1.bf16.msra.mxu0 0
    %174 = vmatprep.subr.bf16.mxu0 0
    %175 = vmatpush1.bf16.msra.mxu0 0
    %176 = vmatprep.subr.bf16.mxu0 0
    %177 = vmatpush1.bf16.msra.mxu0 0
    %178 = vmatprep.subr.bf16.mxu0 0
    %179 = vmatpush1.bf16.msra.mxu0 0
    %180 = vmatprep.subr.bf16.mxu0 0
    %181 = vmatpush1.bf16.msra.mxu0 0
    %182 = vmatprep.subr.bf16.mxu0 0
    %183 = vmatpush1.bf16.msra.mxu0 0
    %184 = vmatprep.subr.bf16.mxu0 0
    %185 = vmatpush1.bf16.msra.mxu0 0
    %186 = vmatprep.mubr.bf16.mxu0 0
    %187 = vmatmul.mubr.bf16.gmra.mrb[0].mxu0 %v82
    %v188 = vpop.f32.mrb[0].mxu0
    %v189 = vadd.f32 %v104, %v188
    %v190 = vpop.f32.mrb[0].mxu0
    %v191 = vpop.f32.mrb[0].mxu0
    %v192 = vpop.f32.mrb[0].mxu0
    %193 = vdwg.mxu0
    %v194 = vtanh.pop %v189
    %v195 = vpack.c.bf16 %v194, %v194
    %v196 = vld [vmem:[#allocation7] sm:$0xf]
    %v197 = vld [vmem:[#allocation7 + $0x4] sm:$0xf]
    %v198 = vld [vmem:[#allocation7 + $0x8] sm:$0xf]
    %v199 = vld [vmem:[#allocation7 + $0xc] sm:$0xf]
    %v200 = vld [vmem:[#allocation7 + $0x10] sm:$0xf]
    %v201 = vld [vmem:[#allocation7 + $0x14] sm:$0xf]
    %v202 = vld [vmem:[#allocation7 + $0x18] sm:$0xf]
    %v203 = vld [vmem:[#allocation7 + $0x1c] sm:$0xf]
    %v204 = vld [vmem:[#allocation7 + $0x20] sm:$0xf]
    %v205 = vld [vmem:[#allocation7 + $0x24] sm:$0xf]
    %v206 = vld [vmem:[#allocation7 + $0x28] sm:$0xf]
    %v207 = vld [vmem:[#allocation7 + $0x2c] sm:$0xf]
    %v208 = vld [vmem:[#allocation7 + $0x30] sm:$0xf]
    %v209 = vld [vmem:[#allocation7 + $0x34] sm:$0xf]
    %v210 = vld [vmem:[#allocation7 + $0x38] sm:$0xf]
    %v211 = vld [vmem:[#allocation7 + $0x3c] sm:$0xf]
    %v212 = vld [vmem:[%s4] sm:$0x1]
    %v214 = vlaneseq
    %v215 = vshrl.u32 %v214, 7
    %v216 = vsub.s32 0, %v215
    %v217 = vrot.slane %v212, %v216
    %v235 = vunpack.c.l.b16 %v196
    %v236 = vunpack.c.l.b16 %v197
    %v237 = vunpack.c.l.b16 %v198
    %v238 = vunpack.c.l.b16 %v199
    %v239 = vunpack.c.l.b16 %v200
    %v240 = vunpack.c.l.b16 %v201
    %v241 = vunpack.c.l.b16 %v202
    %v242 = vunpack.c.l.b16 %v203
    %v243 = vunpack.c.l.b16 %v204
    %v244 = vunpack.c.l.b16 %v205
    %v245 = vunpack.c.l.b16 %v206
    %v246 = vunpack.c.l.b16 %v207
    %v247 = vunpack.c.l.b16 %v208
    %v248 = vunpack.c.l.b16 %v209
    %v249 = vunpack.c.l.b16 %v210
    %v250 = vunpack.c.l.b16 %v211
    %v251 = vpack.c.b16 %v236, %v235
    %v252 = vpack.c.b16 %v238, %v237
    %v253 = vpack.c.b16 %v240, %v239
    %v254 = vpack.c.b16 %v242, %v241
    %v255 = vpack.c.b16 %v244, %v243
    %v256 = vpack.c.b16 %v246, %v245
    %v257 = vpack.c.b16 %v248, %v247
    %v258 = vpack.c.b16 %v250, %v249
    %267 = vmatprep.subr.bf16.mxu0 0
    %268 = vmatpush1.bf16.msra.mxu0 %v251
    %269 = vmatprep.subr.bf16.mxu0 0
    %270 = vmatpush1.bf16.msra.mxu0 %v252
    %271 = vmatprep.subr.bf16.mxu0 0
    %272 = vmatpush1.bf16.msra.mxu0 %v253
    %273 = vmatprep.subr.bf16.mxu0 0
    %274 = vmatpush1.bf16.msra.mxu0 %v254
    %275 = vmatprep.subr.bf16.mxu0 0
    %276 = vmatpush1.bf16.msra.mxu0 %v255
    %277 = vmatprep.subr.bf16.mxu0 0
    %278 = vmatpush1.bf16.msra.mxu0 %v256
    %279 = vmatprep.subr.bf16.mxu0 0
    %280 = vmatpush1.bf16.msra.mxu0 %v257
    %281 = vmatprep.subr.bf16.mxu0 0
    %282 = vmatpush1.bf16.msra.mxu0 %v258
    %283 = vmatprep.subr.bf16.mxu0 0
    %284 = vmatpush1.bf16.msra.mxu0 0
    %285 = vmatprep.subr.bf16.mxu0 0
    %286 = vmatpush1.bf16.msra.mxu0 0
    %287 = vmatprep.subr.bf16.mxu0 0
    %288 = vmatpush1.bf16.msra.mxu0 0
    %289 = vmatprep.subr.bf16.mxu0 0
    %290 = vmatpush1.bf16.msra.mxu0 0
    %291 = vmatprep.subr.bf16.mxu0 0
    %292 = vmatpush1.bf16.msra.mxu0 0
    %293 = vmatprep.subr.bf16.mxu0 0
    %294 = vmatpush1.bf16.msra.mxu0 0
    %295 = vmatprep.subr.bf16.mxu0 0
    %296 = vmatpush1.bf16.msra.mxu0 0
    %297 = vmatprep.subr.bf16.mxu0 0
    %298 = vmatpush1.bf16.msra.mxu0 0
    %299 = vmatprep.mubr.bf16.mxu0 0
    %300 = vmatmul.mubr.bf16.gmra.mrb[0].mxu0 %v195
    %v301 = vpop.f32.mrb[0].mxu0
    %v302 = vadd.f32 %v217, %v301
    %v303 = vpop.f32.mrb[0].mxu0
    %v304 = vpop.f32.mrb[0].mxu0
    %v305 = vpop.f32.mrb[0].mxu0
    %306 = vdwg.mxu0
    %v307 = vtanh.pop %v302
    %v308 = vpack.c.bf16 %v307, %v307
    %v309 = vld [vmem:[#allocation8] sm:$0xf]
    %v310 = vld [vmem:[#allocation8 + $0x4] sm:$0xf]
    %v311 = vld [vmem:[#allocation8 + $0x8] sm:$0xf]
    %v312 = vld [vmem:[#allocation8 + $0xc] sm:$0xf]
    %v313 = vld [vmem:[#allocation8 + $0x10] sm:$0xf]
    %v314 = vld [vmem:[#allocation8 + $0x14] sm:$0xf]
    %v315 = vld [vmem:[#allocation8 + $0x18] sm:$0xf]
    %v316 = vld [vmem:[#allocation8 + $0x1c] sm:$0xf]
    %v317 = vld [vmem:[#allocation8 + $0x20] sm:$0xf]
    %v318 = vld [vmem:[#allocation8 + $0x24] sm:$0xf]
    %v319 = vld [vmem:[#allocation8 + $0x28] sm:$0xf]
    %v320 = vld [vmem:[#allocation8 + $0x2c] sm:$0xf]
    %v321 = vld [vmem:[#allocation8 + $0x30] sm:$0xf]
    %v322 = vld [vmem:[#allocation8 + $0x34] sm:$0xf]
    %v323 = vld [vmem:[#allocation8 + $0x38] sm:$0xf]
    %v324 = vld [vmem:[#allocation8 + $0x3c] sm:$0xf]
    %v325 = vld [vmem:[%s6] sm:$0x1]
    %v327 = vlaneseq
    %v328 = vshrl.u32 %v327, 7
    %v329 = vsub.s32 0, %v328
    %v330 = vrot.slane %v325, %v329
    %v348 = vunpack.c.l.b16 %v309
    %v349 = vunpack.c.l.b16 %v310
    %v350 = vunpack.c.l.b16 %v311
    %v351 = vunpack.c.l.b16 %v312
    %v352 = vunpack.c.l.b16 %v313
    %v353 = vunpack.c.l.b16 %v314
    %v354 = vunpack.c.l.b16 %v315
    %v355 = vunpack.c.l.b16 %v316
    %v356 = vunpack.c.l.b16 %v317
    %v357 = vunpack.c.l.b16 %v318
    %v358 = vunpack.c.l.b16 %v319
    %v359 = vunpack.c.l.b16 %v320
    %v360 = vunpack.c.l.b16 %v321
    %v361 = vunpack.c.l.b16 %v322
    %v362 = vunpack.c.l.b16 %v323
    %v363 = vunpack.c.l.b16 %v324
    %v364 = vpack.c.b16 %v349, %v348
    %v365 = vpack.c.b16 %v351, %v350
    %v366 = vpack.c.b16 %v353, %v352
    %v367 = vpack.c.b16 %v355, %v354
    %v368 = vpack.c.b16 %v357, %v356
    %v369 = vpack.c.b16 %v359, %v358
    %v370 = vpack.c.b16 %v361, %v360
    %v371 = vpack.c.b16 %v363, %v362
    %380 = vmatprep.subr.bf16.mxu0 0
    %381 = vmatpush1.bf16.msra.mxu0 %v364
    %382 = vmatprep.subr.bf16.mxu0 0
    %383 = vmatpush1.bf16.msra.mxu0 %v365
    %384 = vmatprep.subr.bf16.mxu0 0
    %385 = vmatpush1.bf16.msra.mxu0 %v366
    %386 = vmatprep.subr.bf16.mxu0 0
    %387 = vmatpush1.bf16.msra.mxu0 %v367
    %388 = vmatprep.subr.bf16.mxu0 0
    %389 = vmatpush1.bf16.msra.mxu0 %v368
    %390 = vmatprep.subr.bf16.mxu0 0
    %391 = vmatpush1.bf16.msra.mxu0 %v369
    %392 = vmatprep.subr.bf16.mxu0 0
    %393 = vmatpush1.bf16.msra.mxu0 %v370
    %394 = vmatprep.subr.bf16.mxu0 0
    %395 = vmatpush1.bf16.msra.mxu0 %v371
    %396 = vmatprep.subr.bf16.mxu0 0
    %397 = vmatpush1.bf16.msra.mxu0 0
    %398 = vmatprep.subr.bf16.mxu0 0
    %399 = vmatpush1.bf16.msra.mxu0 0
    %400 = vmatprep.subr.bf16.mxu0 0
    %401 = vmatpush1.bf16.msra.mxu0 0
    %402 = vmatprep.subr.bf16.mxu0 0
    %403 = vmatpush1.bf16.msra.mxu0 0
    %404 = vmatprep.subr.bf16.mxu0 0
    %405 = vmatpush1.bf16.msra.mxu0 0
    %406 = vmatprep.subr.bf16.mxu0 0
    %407 = vmatpush1.bf16.msra.mxu0 0
    %408 = vmatprep.subr.bf16.mxu0 0
    %409 = vmatpush1.bf16.msra.mxu0 0
    %410 = vmatprep.subr.bf16.mxu0 0
    %411 = vmatpush1.bf16.msra.mxu0 0
    %412 = vmatprep.mubr.bf16.mxu0 0
    %413 = vmatmul.mubr.bf16.gmra.mrb[0].mxu0 %v308
    %v414 = vpop.f32.mrb[0].mxu0
    %v415 = vadd.f32 %v330, %v414
    %v416 = vpop.f32.mrb[0].mxu0
    %v417 = vpop.f32.mrb[0].mxu0
    %v418 = vpop.f32.mrb[0].mxu0
    %419 = vdwg.mxu0
    %v420 = vmax.f32 %v415, 0.0
    %421 = vst [vmem:[#allocation10] sm:$0xff] %v420
    // Predicated region
    $region46: #{tpu_custom_call.1} parent=1 // pred_check
      _
    $region47: #{tpu_custom_call.1} parent=1 // pred_check_branch
      %423 = sbr.rel (0) target = $region49
    $region48: #{tpu_custom_call.1} parent=1 // pred_region
      %s425 = ssub.s32 128, 128
      %426 = vsyncadd [#allocation4], %s425
      %s428 = sshll.u32 [#allocation10], 4
      %s429 = int_to_ptr.vmem [resolvable:$true] %s428
      %431 = dma.vmem_to_hbm [thread:$0]  %s429, 128, %s7, [#allocation4]
    $region49: #{tpu_custom_call.1} parent=1 // pred_fallthru
      _
    // Predicated region
    $region50: #{tpu_custom_call.1} parent=1 // pred_check
      _
    $region51: #{tpu_custom_call.1} parent=1 // pred_check_branch
      %433 = sbr.rel (0) target = $region53
    $region52: #{tpu_custom_call.1} parent=1 // pred_region
      %434 = dma.done [#allocation4], 128
    $region53: #{tpu_custom_call.1} parent=1 // pred_fallthru
      _
    %435 = vsyncpa [#allocation3], 1
    %436 = vsyncpa [#allocation6], 1
    %437 = vsyncpa [#allocation9], 1
    %438 = vsyncpa [#allocation4], 1

</llo_original>
